<compile_context>
chip_gen: v7x
topology: tpu7x:2x2x1
jax: 0.10.0
libtpu: 0.0.40
codegen_flags: <defaults>
</compile_context>

<pallas_src>
import jax
import jax.numpy as jnp
from jax import lax
from jax.experimental import pallas as pl
from jax.experimental.pallas import tpu as pltpu


def _round_up(v, m):
    return ((v + m - 1) // m) * m


def _chip_defaults():
    """(time_tile, vmem_limit_bytes) sized per TPU generation's VMEM."""
    try:
        cap = getattr(pltpu.get_tpu_info(), "vmem_capacity_bytes", 64 << 20)
    except Exception:
        cap = 64 << 20
    if cap >= (100 << 20):          # v5e / v6e: 128 MiB VMEM
        return 1024, 96 << 20
    return 512, 40 << 20            # v7x: 64 MiB physical (32 MiB default scoped)


def _length_regulator_kernel(mel_len_ref, kblk_ref, cum_ref, dur_ref, x_ref, out_ref):
    # mel_len_ref: SMEM (B,) int32            (scalar prefetch)
    # kblk_ref:    SMEM (B*num_l,) int32      (scalar prefetch; used by index_maps only)
    # cum_ref:     (1, 1, TK) int32  inclusive-cumsum slab (aligned with x slab)
    # dur_ref:     (1, 1, TK) int32  duration slab
    # x_ref:       (1, TK, Dp)
    # out_ref:     (1, TL, Dp)       resident accumulator across the K grid axis
    del kblk_ref
    b = pl.program_id(0)
    lt = pl.program_id(1)
    k = pl.program_id(2)
    TL = out_ref.shape[1]
    j0 = lt * TL                                   # first output frame of this tile

    tile_active = j0 < mel_len_ref[b]

    @pl.when(k == 0)
    def _():
        out_ref[...] = jnp.zeros_like(out_ref)     # init accumulator / zero padding tiles

    @pl.when(tile_active)
    def _():
        cum = cum_ref[0]                           # (1, TK) int32
        cum_prev = cum - dur_ref[0]                # (1, TK) exclusive cumsum
        # (TL, 1) iota; the compares broadcast along lanes against (1, TK).
        j = j0 + lax.broadcasted_iota(jnp.int32, (TL, 1), 0)
        # Rows of `mask` are one-hot, so building it directly in x's dtype is exact.
        mask = jnp.logical_and(j >= cum_prev, j < cum).astype(x_ref.dtype)   # (TL, TK)
        # Slab contributions are disjoint per output row -> plain add is exact.
        out_ref[0] += jnp.dot(mask, x_ref[0],
                              preferred_element_type=jnp.float32).astype(out_ref.dtype)


def length_regulator(x, duration, max_len, *, time_tile=None, k_tile=256,
                     vmem_limit_bytes=None):
    """Pallas LengthRegulator.

    Args:
      x:        [B, T, D] float array
      duration: [B, T] int (per-frame repeat counts)
      max_len:  int, output time length
    Returns:
      output:  [B, max_len, D] (same dtype as x)
      mel_len: [B] int32 (expanded lengths before padding, unclipped — matches
               the PyTorch module)
    """
    B, T, D = x.shape
    duration = jnp.maximum(duration.astype(jnp.int32), 0)   # matches max(int(d), 0)

    tl_default, vmem_default = _chip_defaults()
    if time_tile is None:
        time_tile = tl_default
    if vmem_limit_bytes is None:
        vmem_limit_bytes = vmem_default

    # Compact zero-duration frames to the end (stable order -> identical
    # expansion).  Guarantees the frames feeding one TL output window span at
    # most TL consecutive indices, so the K-restricted window below is exact.
    order = jnp.argsort((duration == 0).astype(jnp.int32), axis=1)
    duration_c = jnp.take_along_axis(duration, order, axis=1)
    x_c = jnp.take_along_axis(x, order[:, :, None], axis=1)

    mel_len = jnp.sum(duration_c, axis=1).astype(jnp.int32)

    # Tile sizes: lane-dense hidden dim; T padded to a multiple of the K tile.
    Dp = _round_up(D, 128)
    TK = min(_round_up(k_tile, 128), _round_up(T, 128))
    Tp = _round_up(T, TK)
    TL = max_len if max_len <= time_tile else time_tile
    num_l = pl.cdiv(max_len, TL)
    num_k_total = Tp // TK
    nk = min(pl.cdiv(TL, TK) + 1, num_k_total)      # K slabs visited per output tile

    pad_t, pad_d = Tp - T, Dp - D
    if pad_t or pad_d:
        x_c = jnp.pad(x_c, ((0, 0), (0, pad_t), (0, pad_d)))
    if pad_t:
        duration_c = jnp.pad(duration_c, ((0, 0), (0, pad_t)))

    cum = jnp.cumsum(duration_c, axis=1).astype(jnp.int32)         # (B, Tp) inclusive

    # First K block touched by each (batch, output-tile): searchsorted(cum, lt*TL),
    # clamped so the nk-slab window stays in range.
    j0s = (jnp.arange(num_l, dtype=jnp.int32) * TL)[None, :, None]  # (1, num_l, 1)
    f0 = jnp.sum(cum[:, None, :] <= j0s, axis=2).astype(jnp.int32)  # (B, num_l)
    kblk = jnp.clip(f0 // TK, 0, num_k_total - nk).reshape(-1)      # (B*num_l,) flat: no SMEM pad

    cum3 = cum[:, None, :]                                          # (B, 1, Tp)
    dur3 = duration_c[:, None, :]                                   # (B, 1, Tp)

    itemsize = int(x.dtype.itemsize)
    cost = pl.CostEstimate(
        flops=int(2 * B * num_l * TL * nk * TK * Dp),
        transcendentals=0,
        bytes_accessed=int(B * max_len * Dp * itemsize              # output writes
                           + B * num_l * nk * TK * Dp * itemsize    # x reads
                           + 2 * B * num_l * nk * TK * 4))          # cum/dur reads

    out = pl.pallas_call(
        _length_regulator_kernel,
        out_shape=jax.ShapeDtypeStruct((B, max_len, Dp), x.dtype),
        grid_spec=pltpu.PrefetchScalarGridSpec(
            num_scalar_prefetch=2,
            grid=(B, num_l, nk),
            in_specs=[
                pl.BlockSpec((1, 1, TK),
                             lambda b, lt, k, ml, kb: (b, 0, kb[b * num_l + lt] + k)),
                pl.BlockSpec((1, 1, TK),
                             lambda b, lt, k, ml, kb: (b, 0, kb[b * num_l + lt] + k)),
                pl.BlockSpec((1, TK, Dp),
                             lambda b, lt, k, ml, kb: (b, kb[b * num_l + lt] + k, 0)),
            ],
            out_specs=pl.BlockSpec((1, TL, Dp),
                                   lambda b, lt, k, ml, kb: (b, lt, 0)),
        ),
        compiler_params=pltpu.CompilerParams(
            dimension_semantics=("parallel", "parallel", "arbitrary"),
            vmem_limit_bytes=vmem_limit_bytes),
        cost_estimate=cost,
    )(mel_len, kblk, cum3, dur3, x_c)

    if Dp != D:
        out = out[:, :, :D]
    return out, mel_len


def _reference(x, duration, max_len):
    """Plain-numpy reference mirroring the PyTorch loop."""
    import numpy as np
    x_np = np.asarray(x)
    d_np = np.asarray(duration)
    B, T, D = x_np.shape
    out = np.zeros((B, max_len, D), dtype=x_np.dtype)
    lens = np.zeros((B,), dtype=np.int32)
    for b in range(B):
        rows = []
        for i in range(T):
            r = max(int(d_np[b, i]), 0)
            rows.append(np.repeat(x_np[b, i:i + 1, :], r, axis=0))
        exp = np.concatenate(rows, axis=0)
        lens[b] = exp.shape[0]
        n = min(exp.shape[0], max_len)
        out[b, :n, :] = exp[:n]
    return out, lens


if __name__ == "__main__":
    import numpy as np

    key = jax.random.PRNGKey(0)
    kx, kd, kx2, kd2 = jax.random.split(key, 4)

    # Small case (single output tile, single K slab).
    B, T, D, max_len = 2, 8, 32, 32
    x = jax.random.normal(kx, (B, T, D), dtype=jnp.float32)
    duration = jax.random.randint(kd, (B, T), 0, 4, dtype=jnp.int32)

    out, mel_len = length_regulator(x, duration, max_len)
    out = jax.block_until_ready(out)
    mel_len = jax.block_until_ready(mel_len)

    ref_out, ref_len = _reference(x, duration, max_len)
    assert out.shape == (B, max_len, D)
    assert np.allclose(np.asarray(out), ref_out, atol=1e-6), "output mismatch"
    assert (np.asarray(mel_len) == ref_len).all(), "mel_len mismatch"

    # Multi-tile case exercising the data-dependent K-restricted x window
    # (num_l=4 output tiles, 4 K blocks total, 2 visited per tile).
    B2, T2, D2, max_len2 = 2, 512, 16, 512
    x2 = jax.random.normal(kx2, (B2, T2, D2), dtype=jnp.float32)
    duration2 = jax.random.randint(kd2, (B2, T2), 0, 3, dtype=jnp.int32)
    out2, mel_len2 = length_regulator(x2, duration2, max_len2,
                                      time_tile=128, k_tile=128)
    out2 = jax.block_until_ready(out2)
    mel_len2 = jax.block_until_ready(mel_len2)
    ref_out2, ref_len2 = _reference(x2, duration2, max_len2)
    assert np.allclose(np.asarray(out2), ref_out2, atol=1e-6), "output mismatch (tiled)"
    assert (np.asarray(mel_len2) == ref_len2).all(), "mel_len mismatch (tiled)"

    print("KERNEL_OK")
</pallas_src>

<mosaic_0001>
module attributes {stable_mosaic.version = 11 : i64} {
  func.func @_length_regulator_kernel(%arg0: i32, %arg1: i32, %arg2: i32, %arg3: memref<2xi32, #tpu.memory_space<smem>>, %arg4: memref<2xi32, #tpu.memory_space<smem>>, %arg5: memref<1x1x128xi32, #tpu.memory_space<vmem>>, %arg6: memref<1x1x128xi32, #tpu.memory_space<vmem>>, %arg7: memref<1x128x128xf32, #tpu.memory_space<vmem>>, %arg8: memref<1x32x128xf32, #tpu.memory_space<vmem>>) attributes {dimension_semantics = [#tpu.dimension_semantics<parallel>, #tpu.dimension_semantics<parallel>, #tpu.dimension_semantics<arbitrary>], iteration_bounds = array<i64: 2, 1, 1>, scalar_prefetch = 2 : i64, scratch_operands = 0 : i64, tpu.core_type = #tpu.core_type<tc>, window_params = [{transform_indices = @transform_0, window_bounds = array<i64: 1, 1, 128>}, {transform_indices = @transform_1, window_bounds = array<i64: 1, 1, 128>}, {transform_indices = @transform_2, window_bounds = array<i64: 1, 128, 128>}, {transform_indices = @transform_3, window_bounds = array<i64: 1, 32, 128>}]} {
    %c32_i32 = arith.constant 32 : i32
    %0 = arith.muli %arg1, %c32_i32 : i32
    %1 = arith.index_cast %arg0 : i32 to index
    %2 = memref.load %arg3[%1] : memref<2xi32, #tpu.memory_space<smem>>
    %3 = arith.cmpi slt, %0, %2 : i32
    %c0_i32 = arith.constant 0 : i32
    %4 = arith.cmpi eq, %arg2, %c0_i32 : i32
    %5 = arith.extui %4 : i1 to i32
    %c0_i32_0 = arith.constant 0 : i32
    %6 = arith.cmpi ne, %5, %c0_i32_0 : i32
    scf.if %6 {
      %cst = arith.constant 0.000000e+00 : f32
      %9 = vector.broadcast %cst : f32 to vector<1x32x128xf32>
      %c0 = arith.constant 0 : index
      %c0_2 = arith.constant 0 : index
      %c0_3 = arith.constant 0 : index
      %10 = vector.load %arg8[%c0, %c0_2, %c0_3] : memref<1x32x128xf32, #tpu.memory_space<vmem>>, vector<1x32x128xf32>
      tpu.vector_store %arg8[%c0, %c0_2, %c0_3], %9 {strides = array<i32>} : memref<1x32x128xf32, #tpu.memory_space<vmem>>, vector<1x32x128xf32>,
    } else {
    }
    %7 = arith.extui %3 : i1 to i32
    %c0_i32_1 = arith.constant 0 : i32
    %8 = arith.cmpi ne, %7, %c0_i32_1 : i32
    scf.if %8 {
      %c0 = arith.constant 0 : index
      %c0_2 = arith.constant 0 : index
      %c0_3 = arith.constant 0 : index
      %9 = vector.load %arg5[%c0, %c0_2, %c0_3] : memref<1x1x128xi32, #tpu.memory_space<vmem>>, vector<1x1x128xi32>
      %10 = vector.shape_cast %9 : vector<1x1x128xi32> to vector<1x128xi32>
      %c0_4 = arith.constant 0 : index
      %c0_5 = arith.constant 0 : index
      %c0_6 = arith.constant 0 : index
      %11 = vector.load %arg6[%c0_4, %c0_5, %c0_6] : memref<1x1x128xi32, #tpu.memory_space<vmem>>, vector<1x1x128xi32>
      %12 = vector.shape_cast %11 : vector<1x1x128xi32> to vector<1x128xi32>
      %13 = arith.subi %10, %12 : vector<1x128xi32>
      %14 = tpu.iota {dimensions = array<i32: 0>} : vector<32x1xi32>
      %15 = vector.broadcast %0 : i32 to vector<32x1xi32>
      %16 = arith.addi %15, %14 : vector<32x1xi32>
      %17 = vector.broadcast %16 : vector<32x1xi32> to vector<32x128xi32>
      %18 = vector.broadcast %13 : vector<1x128xi32> to vector<32x128xi32>
      %19 = arith.cmpi sge, %17, %18 : vector<32x128xi32>
      %20 = vector.broadcast %16 : vector<32x1xi32> to vector<32x128xi32>
      %21 = vector.broadcast %10 : vector<1x128xi32> to vector<32x128xi32>
      %22 = arith.cmpi slt, %20, %21 : vector<32x128xi32>
      %23 = arith.andi %19, %22 : vector<32x128xi1>
      %24 = arith.extui %23 : vector<32x128xi1> to vector<32x128xi32>
      %25 = arith.sitofp %24 : vector<32x128xi32> to vector<32x128xf32>
      %c0_7 = arith.constant 0 : index
      %c0_8 = arith.constant 0 : index
      %c0_9 = arith.constant 0 : index
      %26 = vector.load %arg8[%c0_7, %c0_8, %c0_9] : memref<1x32x128xf32, #tpu.memory_space<vmem>>, vector<1x32x128xf32>
      %27 = vector.shape_cast %26 : vector<1x32x128xf32> to vector<32x128xf32>
      %c0_10 = arith.constant 0 : index
      %c0_11 = arith.constant 0 : index
      %c0_12 = arith.constant 0 : index
      %28 = vector.load %arg7[%c0_10, %c0_11, %c0_12] : memref<1x128x128xf32, #tpu.memory_space<vmem>>, vector<1x128x128xf32>
      %29 = vector.shape_cast %28 : vector<1x128x128xf32> to vector<128x128xf32>
      %cst = arith.constant dense<0.000000e+00> : vector<32x128xf32>
      %30 = tpu.matmul %25, %29, %cst {dimension_numbers = #tpu.dot_dimension_numbers<[1], [0], [0], [1], [0, 0, 1, 1], [], []>} : vector<32x128xf32>, vector<128x128xf32>, vector<32x128xf32> -> vector<32x128xf32>
      %31 = arith.addf %27, %30 : vector<32x128xf32>
      %c0_13 = arith.constant 0 : index
      %c0_14 = arith.constant 0 : index
      %c0_15 = arith.constant 0 : index
      %32 = vector.load %arg8[%c0_13, %c0_14, %c0_15] : memref<1x32x128xf32, #tpu.memory_space<vmem>>, vector<1x32x128xf32>
      %33 = vector.shape_cast %32 : vector<1x32x128xf32> to vector<32x128xf32>
      %34 = vector.shape_cast %31 : vector<32x128xf32> to vector<1x32x128xf32>
      tpu.vector_store %arg8[%c0_13, %c0_14, %c0_15], %34 {strides = array<i32>} : memref<1x32x128xf32, #tpu.memory_space<vmem>>, vector<1x32x128xf32>,
    } else {
    }
    return
  }
  func.func @transform_0(%arg0: i32, %arg1: i32, %arg2: i32, %arg3: memref<2xi32, #tpu.memory_space<smem>>, %arg4: memref<2xi32, #tpu.memory_space<smem>>) -> (i32, i32, i32) {
    %c1_i32 = arith.constant 1 : i32
    %0 = arith.muli %arg0, %c1_i32 : i32
    %1 = arith.addi %0, %arg1 : i32
    %2 = arith.index_cast %1 : i32 to index
    %3 = memref.load %arg4[%2] : memref<2xi32, #tpu.memory_space<smem>>
    %4 = arith.addi %3, %arg2 : i32
    %c0_i32 = arith.constant 0 : i32
    %c0_i32_0 = arith.constant 0 : i32
    return %arg0, %c0_i32, %4 : i32, i32, i32
  }
  func.func @transform_1(%arg0: i32, %arg1: i32, %arg2: i32, %arg3: memref<2xi32, #tpu.memory_space<smem>>, %arg4: memref<2xi32, #tpu.memory_space<smem>>) -> (i32, i32, i32) {
    %c1_i32 = arith.constant 1 : i32
    %0 = arith.muli %arg0, %c1_i32 : i32
    %1 = arith.addi %0, %arg1 : i32
    %2 = arith.index_cast %1 : i32 to index
    %3 = memref.load %arg4[%2] : memref<2xi32, #tpu.memory_space<smem>>
    %4 = arith.addi %3, %arg2 : i32
    %c0_i32 = arith.constant 0 : i32
    %c0_i32_0 = arith.constant 0 : i32
    return %arg0, %c0_i32, %4 : i32, i32, i32
  }
  func.func @transform_2(%arg0: i32, %arg1: i32, %arg2: i32, %arg3: memref<2xi32, #tpu.memory_space<smem>>, %arg4: memref<2xi32, #tpu.memory_space<smem>>) -> (i32, i32, i32) {
    %c1_i32 = arith.constant 1 : i32
    %0 = arith.muli %arg0, %c1_i32 : i32
    %1 = arith.addi %0, %arg1 : i32
    %2 = arith.index_cast %1 : i32 to index
    %3 = memref.load %arg4[%2] : memref<2xi32, #tpu.memory_space<smem>>
    %4 = arith.addi %3, %arg2 : i32
    %c0_i32 = arith.constant 0 : i32
    %c0_i32_0 = arith.constant 0 : i32
    return %arg0, %4, %c0_i32 : i32, i32, i32
  }
  func.func @transform_3(%arg0: i32, %arg1: i32, %arg2: i32, %arg3: memref<2xi32, #tpu.memory_space<smem>>, %arg4: memref<2xi32, #tpu.memory_space<smem>>) -> (i32, i32, i32) {
    %c0_i32 = arith.constant 0 : i32
    %c0_i32_0 = arith.constant 0 : i32
    return %arg0, %arg1, %c0_i32 : i32, i32, i32
  }
}

</mosaic_0001>

<llo_original>
// kernel: tpu_custom_call.1
$region0: #{tpu_custom_call.1}
  #allocation0 [shape = 'u32[]', space=smem, size = 0x4, offset = 0x4, fixed_abs, tag = 'smem constant byte address 0x4 - core index']
  #allocation1 [shape = 'u32[144,128]{1,0:T(1,128)}', space=vmem, size = 0x12000, scoped, tag = 'internal scratch']
  #allocation2 [shape = 's32[1]{0}', space=sflag, size = 0x4, scoped, tag = 'scoped memory for tpu_custom_call.1']
  #allocation3 [shape = 'u8[512]{0}', space=smem, size = 0x200, scoped, tag = 'prefetched SMEM operand 0']
  #allocation4 [shape = 'u8[512]{0}', space=smem, size = 0x200, scoped, tag = 'prefetched SMEM operand 1']
  %s0 = inlined_call_operand.hbm [shape: s32[2], index: 0, kind: input, shape index: {}]
  %s1 = inlined_call_operand.vmem [shape: s32[2], index: 1, kind: input, shape index: {}]
  %s2 = inlined_call_operand.vmem [shape: s32[2,1,128], index: 2, kind: input, shape index: {}]
  %s3 = inlined_call_operand.vmem [shape: s32[2,1,128], index: 3, kind: input, shape index: {}]
  %s4 = inlined_call_operand.hbm [shape: f32[2,128,128], index: 4, kind: input, shape index: {}]
  %s5 = inlined_call_operand.hbm [shape: f32[2,32,128], index: 5, kind: output, shape index: {}]
  %s6 = sld [smem:[#allocation0]]
  $region57: #{tpu_custom_call.1} parent=0
    _
  %s8 = ssub.s32 1, %s6
  %s9 = scalar_select 0, %s8, %s6
  %11 = dma.hbm_to_smem %s0, 16, [#allocation3], [#allocation2]
  %s12 = sshll.u32 %s1, 4
  %s13 = int_to_ptr.vmem [resolvable:$true] %s12
  %15 = dma.vmem_to_smem %s13, 16, [#allocation4], [#allocation2]
  %16 = dma.done [#allocation2], 32
  %17 = sfence
  $region1: #{tpu_custom_call.1} parent=0
    #allocation5 [shape = 'u8[131072]{0}', space=vmem, size = 0x20000, scoped, tag = 'input window, operand 4']
    #allocation6 [shape = 's32[2]{0}', space=sflag, size = 0x8, scoped, tag = 'scoped memory for tpu_custom_call.1']
    #allocation7 [shape = 's32[2]{0}', space=sflag, size = 0x8, scoped, tag = 'scoped memory for tpu_custom_call.1']
    #allocation8 [shape = 'u8[32768]{0}', space=vmem, size = 0x8000, scoped, tag = 'output window, operand 0']
    %18 = vsyncpa [#allocation6], 0
    %s19 = scalar_lea.sflag [#allocation6], 1
    %20 = vsyncpa %s19, 0
    %21 = vsyncpa [#allocation7], 0
    %s22 = scalar_lea.sflag [#allocation7], 1
    %23 = vsyncpa %s22, 0
    loop: start=0, step=1, limit=4
    $region2: #{tpu_custom_call.1} parent=1 // loop_pre_header
      _
    $region3: #{tpu_custom_call.1} parent=1 // loop_header
      %s25 = sphi 0, %s29
      %p26 = scmp.ge.s32.totalorder %s25, 4
      %s32 = sphi 0, %s51
      %s33 = sphi 0, %s47
      %s34 = sphi 0, %s43
      %s35 = sphi 0, %s32
      %s36 = sphi 0, %s33
      %s37 = sphi 0, %s34
      %s38 = sphi 0, %s35
      %s39 = sphi 0, %s36
      %s40 = sphi 0, %s37
      %s62 = sphi 0, %s64
      %s65 = sphi 0, %s62
      %s66 = sphi 0, %s65
      %s82 = sphi 0, %s66
      %s96 = sphi 0, %s98
      %s99 = sphi 0, %s96
      %s100 = sphi 0, %s99
      %s116 = sphi 0, %s100
      %s130 = sphi 0, %s132
      %s133 = sphi 0, %s130
      %s134 = sphi 0, %s133
      %s150 = sphi 0, %s134
      %s158 = sphi 0, %s160
      %s161 = sphi 0, %s158
      %s162 = sphi 0, %s161
      %s178 = sphi 0, %s162
    $region4: #{tpu_custom_call.1} parent=1 // loop_header_branch
      %28 = sbr.rel (%p26) target = $region8
    $region5: #{tpu_custom_call.1} parent=1 // loop_body
      %s30 = ssub.s32 %s25, 1
      %s31 = ssub.s32 %s25, 2
      %s41 = sadd.s32 1, %s34
      %p42 = scmp.ge.s32.totalorder %s41, 1
      %s43 = scalar_select %p42, 0, %s41
      %s44 = sadd.s32 1, %s33
      %s45 = scalar_select %p42, %s44, %s33
      %p46 = scmp.ge.s32.totalorder %s45, 1
      %s47 = scalar_select %p46, 0, %s45
      %s48 = sadd.s32 1, %s32
      %s49 = scalar_select %p46, %s48, %s32
      %p50 = scmp.ge.s32.totalorder %s49, 2
      %s51 = scalar_select %p50, 0, %s49
      %s52 = sadd.s32 %s32, %s33
      %s53 = sld [smem:[#allocation4 + %s52]]
      %s54 = sadd.s32 %s53, %s34
      %s55 = sadd.s32 %s51, %s47
      %s56 = sld [smem:[#allocation4 + %s55]]
      %s57 = sadd.s32 %s56, %s43
      %s58 = ssub.s32 %s32, %s51
      %s59 = ssub.s32 %s54, %s57
      %s60 = sor.u32 %s58, %s59
      %p61 = scmp.eq.s32.totalorder %s60, 0
      %s63 = sadd.s32 %s62, 1
      %s64 = scalar_select %p61, %s62, %s63
      %p67 = pneg %p61
      %p68 = scmp.eq.s32.totalorder %s25, 1
      %p69 = por %p67, %p68
      %p70 = scmp.ne.s32.totalorder %s62, %s65
      %p71 = scmp.eq.s32.totalorder %s25, 0
      %p72 = por %p70, %p71
      %p73 = scmp.ne.s32.totalorder %s62, %s65
      %p74 = scmp.eq.s32.totalorder %s30, 1
      %p75 = por %p73, %p74
      %p76 = scmp.ne.s32.totalorder %s65, %s66
      %p77 = scmp.eq.s32.totalorder %s30, 0
      %p78 = por %p76, %p77
      %p79 = scmp.ne.s32.totalorder %s65, %s66
      %p80 = scmp.eq.s32.totalorder %s31, 1
      %p81 = por %p79, %p80
      %p83 = scmp.ne.s32.totalorder %s66, %s82
      %p84 = scmp.eq.s32.totalorder %s31, 0
      %p85 = por %p83, %p84
      %s86 = sadd.s32 %s32, %s33
      %s87 = sld [smem:[#allocation4 + %s86]]
      %s88 = sadd.s32 %s87, %s34
      %s89 = sadd.s32 %s51, %s47
      %s90 = sld [smem:[#allocation4 + %s89]]
      %s91 = sadd.s32 %s90, %s43
      %s92 = ssub.s32 %s32, %s51
      %s93 = ssub.s32 %s88, %s91
      %s94 = sor.u32 %s92, %s93
      %p95 = scmp.eq.s32.totalorder %s94, 0
      %s97 = sadd.s32 %s96, 1
      %s98 = scalar_select %p95, %s96, %s97
      %p101 = pneg %p95
      %p102 = scmp.eq.s32.totalorder %s25, 1
      %p103 = por %p101, %p102
      %p104 = scmp.ne.s32.totalorder %s96, %s99
      %p105 = scmp.eq.s32.totalorder %s25, 0
      %p106 = por %p104, %p105
      %p107 = scmp.ne.s32.totalorder %s96, %s99
      %p108 = scmp.eq.s32.totalorder %s30, 1
      %p109 = por %p107, %p108
      %p110 = scmp.ne.s32.totalorder %s99, %s100
      %p111 = scmp.eq.s32.totalorder %s30, 0
      %p112 = por %p110, %p111
      %p113 = scmp.ne.s32.totalorder %s99, %s100
      %p114 = scmp.eq.s32.totalorder %s31, 1
      %p115 = por %p113, %p114
      %p117 = scmp.ne.s32.totalorder %s100, %s116
      %p118 = scmp.eq.s32.totalorder %s31, 0
      %p119 = por %p117, %p118
      %s120 = sadd.s32 %s32, %s33
      %s121 = sld [smem:[#allocation4 + %s120]]
      %s122 = sadd.s32 %s121, %s34
      %s123 = sadd.s32 %s51, %s47
      %s124 = sld [smem:[#allocation4 + %s123]]
      %s125 = sadd.s32 %s124, %s43
      %s126 = ssub.s32 %s32, %s51
      %s127 = ssub.s32 %s122, %s125
      %s128 = sor.u32 %s126, %s127
      %p129 = scmp.eq.s32.totalorder %s128, 0
      %s131 = sadd.s32 %s130, 1
      %s132 = scalar_select %p129, %s130, %s131
      %p135 = pneg %p129
      %p136 = scmp.eq.s32.totalorder %s25, 1
      %p137 = por %p135, %p136
      %p138 = scmp.ne.s32.totalorder %s130, %s133
      %p139 = scmp.eq.s32.totalorder %s25, 0
      %p140 = por %p138, %p139
      %p141 = scmp.ne.s32.totalorder %s130, %s133
      %p142 = scmp.eq.s32.totalorder %s30, 1
      %p143 = por %p141, %p142
      %p144 = scmp.ne.s32.totalorder %s133, %s134
      %p145 = scmp.eq.s32.totalorder %s30, 0
      %p146 = por %p144, %p145
      %p147 = scmp.ne.s32.totalorder %s133, %s134
      %p148 = scmp.eq.s32.totalorder %s31, 1
      %p149 = por %p147, %p148
      %p151 = scmp.ne.s32.totalorder %s134, %s150
      %p152 = scmp.eq.s32.totalorder %s31, 0
      %p153 = por %p151, %p152
      %s154 = ssub.s32 %s32, %s51
      %s155 = ssub.s32 %s33, %s47
      %s156 = sor.u32 %s154, %s155
      %p157 = scmp.eq.s32.totalorder %s156, 0
      %s159 = sadd.s32 %s158, 1
      %s160 = scalar_select %p157, %s158, %s159
      %p163 = pneg %p157
      %p164 = scmp.eq.s32.totalorder %s25, 1
      %p165 = por %p163, %p164
      %p166 = scmp.ne.s32.totalorder %s158, %s161
      %p167 = scmp.eq.s32.totalorder %s25, 0
      %p168 = por %p166, %p167
      %p169 = scmp.ne.s32.totalorder %s158, %s161
      %p170 = scmp.eq.s32.totalorder %s30, 1
      %p171 = por %p169, %p170
      %p172 = scmp.ne.s32.totalorder %s161, %s162
      %p173 = scmp.eq.s32.totalorder %s30, 0
      %p174 = por %p172, %p173
      %p175 = scmp.ne.s32.totalorder %s161, %s162
      %p176 = scmp.eq.s32.totalorder %s31, 1
      %p177 = por %p175, %p176
      %p179 = scmp.ne.s32.totalorder %s162, %s178
      %p180 = scmp.eq.s32.totalorder %s31, 0
      %p181 = por %p179, %p180
      %p182 = scmp.le.s32.totalorder 1, %s25
      %p183 = scmp.lt.s32.totalorder %s25, 3
      %p184 = pnand %p182, %p183
      %p185 = pneg %p184
      // Predicated region
      $region9: #{tpu_custom_call.1} parent=5 // pred_check
        _
      $region10: #{tpu_custom_call.1} parent=5 // pred_check_branch
        %187 = sbr.rel (%p184) target = $region12
      $region11: #{tpu_custom_call.1} parent=5 // pred_region
        %s188 = ssub.s32 %s25, 1
      $region12: #{tpu_custom_call.1} parent=5 // pred_fallthru
        _
      %p189 = scmp.lt.s32.totalorder %s25, 2
      // Predicated region
      $region13: #{tpu_custom_call.1} parent=5 // pred_check
        %p190 = pneg %p189
      $region14: #{tpu_custom_call.1} parent=5 // pred_check_branch
        %192 = sbr.rel (%p190) target = $region16
      $region15: #{tpu_custom_call.1} parent=5 // pred_region
        // Predicated region
        $region17: #{tpu_custom_call.1} parent=15 // pred_check
          %p193 = pneg %p72
        $region18: #{tpu_custom_call.1} parent=15 // pred_check_branch
          %195 = sbr.rel (%p193) target = $region20
        $region19: #{tpu_custom_call.1} parent=15 // pred_region
          %s196 = sadd.s32 %s32, %s33
          %s197 = sld [smem:[#allocation4 + %s196]]
          %s198 = sadd.s32 %s197, %s34
          %p199 = scmp.lt.s32.totalorder %s32, 1
          %s200 = scalar_select %p199, %s32, 1
          %p201 = scmp.lt.s32.totalorder %s198, 0
          %s202 = scalar_select %p201, %s198, 0
          %s203 = sadd.s32 %s202, %s200
          %s204 = scalar_lea.vmem %s2, %s203
          %s205 = sadd.s32 %s32, %s33
          %s206 = sld [smem:[#allocation4 + %s205]]
          %s207 = sadd.s32 %s206, %s34
        $region20: #{tpu_custom_call.1} parent=15 // pred_fallthru
          _
        // Predicated region
        $region21: #{tpu_custom_call.1} parent=15 // pred_check
          %p208 = pneg %p106
        $region22: #{tpu_custom_call.1} parent=15 // pred_check_branch
          %210 = sbr.rel (%p208) target = $region24
        $region23: #{tpu_custom_call.1} parent=15 // pred_region
          %s211 = sadd.s32 %s32, %s33
          %s212 = sld [smem:[#allocation4 + %s211]]
          %s213 = sadd.s32 %s212, %s34
          %p214 = scmp.lt.s32.totalorder %s32, 1
          %s215 = scalar_select %p214, %s32, 1
          %p216 = scmp.lt.s32.totalorder %s213, 0
          %s217 = scalar_select %p216, %s213, 0
          %s218 = sadd.s32 %s217, %s215
          %s219 = scalar_lea.vmem %s3, %s218
          %s220 = sadd.s32 %s32, %s33
          %s221 = sld [smem:[#allocation4 + %s220]]
          %s222 = sadd.s32 %s221, %s34
        $region24: #{tpu_custom_call.1} parent=15 // pred_fallthru
          _
        // Predicated region
        $region25: #{tpu_custom_call.1} parent=15 // pred_check
          %p223 = pneg %p140
        $region26: #{tpu_custom_call.1} parent=15 // pred_check_branch
          %225 = sbr.rel (%p223) target = $region28
        $region27: #{tpu_custom_call.1} parent=15 // pred_region
          %s226 = sand.u32 %s130, 1
          %s227 = scalar_lea.sflag [#allocation6], %s226
          %s228 = sand.u32 %s130, 1
          %s229 = smul.addr %s228, 128
          %s230 = scalar_lea.vmem [#allocation5], %s229
          %s231 = sadd.s32 %s32, %s33
          %s232 = sld [smem:[#allocation4 + %s231]]
          %s233 = sadd.s32 %s232, %s34
          %s234 = smul.u32 16, %s233
          %s236 = ssub.s32 2048, 2048
          %237 = vsyncadd %s227, %s236
          %s238 = smul.addr %s32, 16
          %s239 = sadd.s32 %s234, %s238
          %s240 = smul.addr %s239, 128
          %s241 = scalar_lea.hbm %s4, %s240
          %s242 = sshll.u32 %s230, 4
          %s243 = int_to_ptr.vmem [resolvable:$true] %s242
          %248 = dma.hbm_to_vmem [thread:$0]  %s241, 2048, %s243, %s227, 128, 128, 8
        $region28: #{tpu_custom_call.1} parent=15 // pred_fallthru
          _
      $region16: #{tpu_custom_call.1} parent=5 // pred_fallthru
        _
      %p249 = scmp.le.s32.totalorder 1, %s25
      %p250 = scmp.lt.s32.totalorder %s25, 3
      %p251 = pnand %p249, %p250
      %p252 = pneg %p251
      // Predicated region
      $region29: #{tpu_custom_call.1} parent=5 // pred_check
        _
      $region30: #{tpu_custom_call.1} parent=5 // pred_check_branch
        %254 = sbr.rel (%p251) target = $region32
      $region31: #{tpu_custom_call.1} parent=5 // pred_region
        %s255 = ssub.s32 %s25, 1
        %s256 = sand.u32 %s133, 1
        %s257 = scalar_lea.sflag [#allocation6], %s256
        %s258 = sand.u32 %s133, 1
        %s259 = smul.addr %s258, 128
        %s260 = scalar_lea.vmem [#allocation5], %s259
        // Predicated region
        $region33: #{tpu_custom_call.1} parent=31 // pred_check
          %p261 = pneg %p146
        $region34: #{tpu_custom_call.1} parent=31 // pred_check_branch
          %263 = sbr.rel (%p261) target = $region36
        $region35: #{tpu_custom_call.1} parent=31 // pred_region
          %264 = dma.done %s257, 2048
        $region36: #{tpu_custom_call.1} parent=31 // pred_fallthru
          _
        %s265 = sadd.s32 %s35, %s36
        %s266 = sld [smem:[#allocation4 + %s265]]
        %s267 = sadd.s32 %s266, %s37
        %p268 = scmp.lt.s32.totalorder %s35, 1
        %s269 = scalar_select %p268, %s35, 1
        %p270 = scmp.lt.s32.totalorder %s267, 0
        %s271 = scalar_select %p270, %s267, 0
        %s272 = sadd.s32 %s271, %s269
        %s273 = scalar_lea.vmem %s2, %s272
        %p274 = pneg %p78
        %p275 = pneg %p75
        %s276 = sadd.s32 %s35, %s36
        %s277 = sld [smem:[#allocation4 + %s276]]
        %s278 = sadd.s32 %s277, %s37
        %p279 = scmp.lt.s32.totalorder %s35, 1
        %s280 = scalar_select %p279, %s35, 1
        %p281 = scmp.lt.s32.totalorder %s278, 0
        %s282 = scalar_select %p281, %s278, 0
        %s283 = sadd.s32 %s282, %s280
        %s284 = scalar_lea.vmem %s3, %s283
        %p285 = pneg %p112
        %p286 = pneg %p109
        %s287 = sand.u32 %s133, 1
        %s288 = scalar_lea.sflag [#allocation6], %s287
        %s289 = sand.u32 %s133, 1
        %s290 = smul.addr %s289, 128
        %s291 = scalar_lea.vmem [#allocation5], %s290
        %p292 = pneg %p146
        %p293 = pneg %p143
        %p294 = pneg %p174
        %p295 = pneg %p171
        %s296 = sand.u32 %s161, 1
        %s297 = scalar_lea.sflag [#allocation7], %s296
        %s298 = sand.u32 %s161, 1
        %s299 = smul.addr %s298, 32
        %s300 = scalar_lea.vmem [#allocation8], %s299
        %s301 = sadd.s32 %s35, %s36
        %s302 = sld [smem:[#allocation4 + %s301]]
        %s303 = sadd.s32 %s302, %s37
        %p304 = scmp.lt.s32.totalorder %s35, 1
        %s305 = scalar_select %p304, %s35, 1
        %p306 = scmp.lt.s32.totalorder %s303, 0
        %s307 = scalar_select %p306, %s303, 0
        %s308 = sadd.s32 %s307, %s305
        %s309 = scalar_lea.vmem %s2, %s308
        %s310 = sadd.s32 %s35, %s36
        %s311 = sld [smem:[#allocation4 + %s310]]
        %s312 = sadd.s32 %s311, %s37
        %s313 = sadd.s32 %s35, %s36
        %s314 = sld [smem:[#allocation4 + %s313]]
        %s315 = sadd.s32 %s314, %s37
        %p316 = scmp.lt.s32.totalorder %s35, 1
        %s317 = scalar_select %p316, %s35, 1
        %p318 = scmp.lt.s32.totalorder %s315, 0
        %s319 = scalar_select %p318, %s315, 0
        %s320 = sadd.s32 %s319, %s317
        %s321 = scalar_lea.vmem %s3, %s320
        %s322 = sadd.s32 %s35, %s36
        %s323 = sld [smem:[#allocation4 + %s322]]
        %s324 = sadd.s32 %s323, %s37
        %s325 = sadd.s32 %s35, %s36
        %s326 = sld [smem:[#allocation4 + %s325]]
        %s327 = sadd.s32 %s326, %s37
        %s328 = smul.u32 16, %s327
        %s329 = smul.u32 4, %s36
        %s330 = smul.u32 %s36, 32
        %s331 = sld [smem:[#allocation3 + %s35]]
        %p332 = scmp.lt.s32.totalorder %s330, %s331
        %p333 = scmp.eq.s32.totalorder %s37, 0
        // Predicated region
        $region37: #{tpu_custom_call.1} parent=31 // pred_check
          %p334 = pneg %p333
        $region38: #{tpu_custom_call.1} parent=31 // pred_check_branch
          %336 = sbr.rel (%p334) target = $region40
        $region39: #{tpu_custom_call.1} parent=31 // pred_region
          %337 = vst [vmem:[%s300] sm:$0xff] 0.0
          %338 = vst [vmem:[%s300 + $0x8] sm:$0xff] 0.0
          %339 = vst [vmem:[%s300 + $0x10] sm:$0xff] 0.0
          %340 = vst [vmem:[%s300 + $0x18] sm:$0xff] 0.0
        $region40: #{tpu_custom_call.1} parent=31 // pred_fallthru
          _
        // Predicated region
        $region41: #{tpu_custom_call.1} parent=31 // pred_check
          %p341 = pneg %p332
        $region42: #{tpu_custom_call.1} parent=31 // pred_check_branch
          %343 = sbr.rel (%p341) target = $region44
        $region43: #{tpu_custom_call.1} parent=31 // pred_region
          %v344 = vld [vmem:[%s309] sm:$0x1]
          %v345 = vld [vmem:[%s321] sm:$0x1]
          %v346 = vsub.s32 %v344, %v345
          %v347 = vlaneseq
          %v348 = vshrl.u32 %v347, 7
          %v349 = vadd.s32 %v348, 8
          %v350 = vadd.s32 %v348, 16
          %v351 = vadd.s32 %v348, 24
          %v352 = vstv %s330
          %v353 = vadd.s32 %v352, %v348
          %v354 = vadd.s32 %v352, %v349
          %v355 = vadd.s32 %v352, %v350
          %v356 = vadd.s32 %v352, %v351
          %v357 = vlaneseq
          %v358 = vshrl.u32 %v357, 7
          %v359 = vsub.s32 0, %v358
          %v360 = vrot.slane %v346, %v359
          %vm361 = vcmp.ge.s32.totalorder %v353, %v360
          %vm362 = vcmp.ge.s32.totalorder %v354, %v360
          %vm363 = vcmp.ge.s32.totalorder %v355, %v360
          %vm364 = vcmp.ge.s32.totalorder %v356, %v360
          %v365 = vlaneseq
          %v366 = vshrl.u32 %v365, 7
          %v367 = vsub.s32 0, %v366
          %v368 = vrot.slane %v344, %v367
          %vm369 = vcmp.lt.s32.totalorder %v353, %v368
          %vm370 = vcmp.lt.s32.totalorder %v354, %v368
          %vm371 = vcmp.lt.s32.totalorder %v355, %v368
          %vm372 = vcmp.lt.s32.totalorder %v356, %v368
          %vm373 = vmand %vm361, %vm369
          %vm374 = vmand %vm362, %vm370
          %vm375 = vmand %vm363, %vm371
          %vm376 = vmand %vm364, %vm372
          %v377 = vsel %vm373, 1, 0
          %v378 = vsel %vm374, 1, 0
          %v379 = vsel %vm375, 1, 0
          %v380 = vsel %vm376, 1, 0
          %v381 = vcvt.s32.f32 %v377
          %v382 = vcvt.s32.f32 %v378
          %v383 = vcvt.s32.f32 %v379
          %v384 = vcvt.s32.f32 %v380
          %v385 = vld [vmem:[%s300] sm:$0xff]
          %v386 = vld [vmem:[%s300 + $0x8] sm:$0xff]
          %v387 = vld [vmem:[%s300 + $0x10] sm:$0xff]
          %v388 = vld [vmem:[%s300 + $0x18] sm:$0xff]
          %v389 = vld [vmem:[%s260] sm:$0xff]
          %v390 = vld [vmem:[%s260 + $0x8] sm:$0xff]
          %v391 = vld [vmem:[%s260 + $0x10] sm:$0xff]
          %v392 = vld [vmem:[%s260 + $0x18] sm:$0xff]
          %v393 = vld [vmem:[%s260 + $0x20] sm:$0xff]
          %v394 = vld [vmem:[%s260 + $0x28] sm:$0xff]
          %v395 = vld [vmem:[%s260 + $0x30] sm:$0xff]
          %v396 = vld [vmem:[%s260 + $0x38] sm:$0xff]
          %v397 = vld [vmem:[%s260 + $0x40] sm:$0xff]
          %v398 = vld [vmem:[%s260 + $0x48] sm:$0xff]
          %v399 = vld [vmem:[%s260 + $0x50] sm:$0xff]
          %v400 = vld [vmem:[%s260 + $0x58] sm:$0xff]
          %v401 = vld [vmem:[%s260 + $0x60] sm:$0xff]
          %v402 = vld [vmem:[%s260 + $0x68] sm:$0xff]
          %v403 = vld [vmem:[%s260 + $0x70] sm:$0xff]
          %v404 = vld [vmem:[%s260 + $0x78] sm:$0xff]
          %405 = vmatprep.subr.mxu0 0.0
          %406 = vmatpush1.msra.mxu0 %v389
          %407 = vmatprep.subr.mxu0 0.0
          %408 = vmatpush1.msra.mxu0 %v390
          %409 = vmatprep.subr.mxu0 0.0
          %410 = vmatpush1.msra.mxu0 %v391
          %411 = vmatprep.subr.mxu0 0.0
          %412 = vmatpush1.msra.mxu0 %v392
          %413 = vmatprep.subr.mxu0 0.0
          %414 = vmatpush1.msra.mxu0 %v393
          %415 = vmatprep.subr.mxu0 0.0
          %416 = vmatpush1.msra.mxu0 %v394
          %417 = vmatprep.subr.mxu0 0.0
          %418 = vmatpush1.msra.mxu0 %v395
          %419 = vmatprep.subr.mxu0 0.0
          %420 = vmatpush1.msra.mxu0 %v396
          %421 = vmatprep.subr.mxu0 0.0
          %422 = vmatpush1.msra.mxu0 %v397
          %423 = vmatprep.subr.mxu0 0.0
          %424 = vmatpush1.msra.mxu0 %v398
          %425 = vmatprep.subr.mxu0 0.0
          %426 = vmatpush1.msra.mxu0 %v399
          %427 = vmatprep.subr.mxu0 0.0
          %428 = vmatpush1.msra.mxu0 %v400
          %429 = vmatprep.subr.mxu0 0.0
          %430 = vmatpush1.msra.mxu0 %v401
          %431 = vmatprep.subr.mxu0 0.0
          %432 = vmatpush1.msra.mxu0 %v402
          %433 = vmatprep.subr.mxu0 0.0
          %434 = vmatpush1.msra.mxu0 %v403
          %435 = vmatprep.subr.mxu0 0.0
          %436 = vmatpush1.msra.mxu0 %v404
          %437 = vmatprep.subr.mxu0 0.0
          %438 = vmatpush1.msra.mxu0 0.0
          %439 = vmatprep.subr.mxu0 0.0
          %440 = vmatpush1.msra.mxu0 0.0
          %441 = vmatprep.subr.mxu0 0.0
          %442 = vmatpush1.msra.mxu0 0.0
          %443 = vmatprep.subr.mxu0 0.0
          %444 = vmatpush1.msra.mxu0 0.0
          %445 = vmatprep.subr.mxu0 0.0
          %446 = vmatpush1.msra.mxu0 0.0
          %447 = vmatprep.subr.mxu0 0.0
          %448 = vmatpush1.msra.mxu0 0.0
          %449 = vmatprep.subr.mxu0 0.0
          %450 = vmatpush1.msra.mxu0 0.0
          %451 = vmatprep.subr.mxu0 0.0
          %452 = vmatpush1.msra.mxu0 0.0
          %453 = vmatprep.subr.mxu0 0.0
          %454 = vmatpush1.msra.mxu0 0.0
          %455 = vmatprep.subr.mxu0 0.0
          %456 = vmatpush1.msra.mxu0 0.0
          %457 = vmatprep.subr.mxu0 0.0
          %458 = vmatpush1.msra.mxu0 0.0
          %459 = vmatprep.subr.mxu0 0.0
          %460 = vmatpush1.msra.mxu0 0.0
          %461 = vmatprep.subr.mxu0 0.0
          %462 = vmatpush1.msra.mxu0 0.0
          %463 = vmatprep.subr.mxu0 0.0
          %464 = vmatpush1.msra.mxu0 0.0
          %465 = vmatprep.subr.mxu0 0.0
          %466 = vmatpush1.msra.mxu0 0.0
          %467 = vmatprep.subr.mxu0 0.0
          %468 = vmatpush1.msra.mxu0 0.0
          %469 = vmatprep.mubr.f32.mxu0 0.0
          %470 = vmatmul.mubr.f32.gmra.mrb[0].mxu0 %v381
          %v471 = vpop.f32.mrb[0].mxu0
          %v472 = vadd.f32 0.0, %v471
          %v473 = vpop.f32.mrb[0].mxu0
          %474 = vmatprep.mubr.f32.mxu0 0.0
          %475 = vmatmul.mubr.f32.gmra.mrb[0].mxu0 %v382
          %v476 = vpop.f32.mrb[0].mxu0
          %v477 = vadd.f32 0.0, %v476
          %v478 = vpop.f32.mrb[0].mxu0
          %479 = vmatprep.mubr.f32.mxu0 0.0
          %480 = vmatmul.mubr.f32.gmra.mrb[0].mxu0 %v383
          %v481 = vpop.f32.mrb[0].mxu0
          %v482 = vadd.f32 0.0, %v481
          %v483 = vpop.f32.mrb[0].mxu0
          %484 = vmatprep.mubr.f32.mxu0 0.0
          %485 = vmatmul.mubr.f32.gmra.mrb[0].mxu0 %v384
          %v486 = vpop.f32.mrb[0].mxu0
          %v487 = vadd.f32 0.0, %v486
          %v488 = vpop.f32.mrb[0].mxu0
          %489 = vdwg.mxu0
          %v490 = vadd.f32 %v385, %v472
          %v491 = vadd.f32 %v386, %v477
          %v492 = vadd.f32 %v387, %v482
          %v493 = vadd.f32 %v388, %v487
          %494 = vst [vmem:[%s300] sm:$0xff] %v490
          %495 = vst [vmem:[%s300 + $0x8] sm:$0xff] %v491
          %496 = vst [vmem:[%s300 + $0x10] sm:$0xff] %v492
          %497 = vst [vmem:[%s300 + $0x18] sm:$0xff] %v493
        $region44: #{tpu_custom_call.1} parent=31 // pred_fallthru
          _
        %s498 = sand.u32 %s161, 1
        %s499 = scalar_lea.sflag [#allocation7], %s498
        %s500 = sand.u32 %s161, 1
        %s501 = smul.addr %s500, 32
        %s502 = scalar_lea.vmem [#allocation8], %s501
        // Predicated region
        $region45: #{tpu_custom_call.1} parent=31 // pred_check
          %p503 = pneg %p171
        $region46: #{tpu_custom_call.1} parent=31 // pred_check_branch
          %505 = sbr.rel (%p503) target = $region48
        $region47: #{tpu_custom_call.1} parent=31 // pred_region
          %s506 = smul.u32 4, %s36
          %s508 = ssub.s32 512, 512
          %509 = vsyncadd %s499, %s508
          %s510 = smul.addr %s35, 4
          %s511 = sadd.s32 %s506, %s510
          %s512 = smul.addr %s511, 128
          %s513 = scalar_lea.hbm %s5, %s512
          %s514 = sshll.u32 %s502, 4
          %s515 = int_to_ptr.vmem [resolvable:$true] %s514
          %520 = dma.vmem_to_hbm [thread:$0]  %s515, 512, %s513, %s499, 128, 128, 8
        $region48: #{tpu_custom_call.1} parent=31 // pred_fallthru
          _
      $region32: #{tpu_custom_call.1} parent=5 // pred_fallthru
        _
      %p521 = scmp.le.s32.totalorder 2, %s25
      // Predicated region
      $region49: #{tpu_custom_call.1} parent=5 // pred_check
        %p522 = pneg %p521
      $region50: #{tpu_custom_call.1} parent=5 // pred_check_branch
        %524 = sbr.rel (%p522) target = $region52
      $region51: #{tpu_custom_call.1} parent=5 // pred_region
        %s525 = ssub.s32 %s25, 2
        // Predicated region
        $region53: #{tpu_custom_call.1} parent=51 // pred_check
          %p526 = pneg %p177
        $region54: #{tpu_custom_call.1} parent=51 // pred_check_branch
          %528 = sbr.rel (%p526) target = $region56
        $region55: #{tpu_custom_call.1} parent=51 // pred_region
          %s529 = sand.u32 %s162, 1
          %s530 = scalar_lea.sflag [#allocation7], %s529
          %s531 = sand.u32 %s162, 1
          %s532 = smul.addr %s531, 32
          %s533 = scalar_lea.vmem [#allocation8], %s532
          %534 = dma.done %s530, 512
        $region56: #{tpu_custom_call.1} parent=51 // pred_fallthru
          _
      $region52: #{tpu_custom_call.1} parent=5 // pred_fallthru
        _
    $region6: #{tpu_custom_call.1} parent=1 // loop_footer
      %s29 = sadd.s32 1, %s25
    $region7: #{tpu_custom_call.1} parent=1 // loop_footer_branch
      %24 = sbr.rel target = $region3
    $region8: #{tpu_custom_call.1} parent=1 // loop_exit
      _
    %535 = vsyncpa [#allocation6], 1
    %s536 = scalar_lea.sflag [#allocation6], 1
    %537 = vsyncpa %s536, 1
    %538 = vsyncpa [#allocation7], 1
    %s539 = scalar_lea.sflag [#allocation7], 1
    %540 = vsyncpa %s539, 1

</llo_original>
